<compile_context>
chip_gen: v7x
topology: tpu7x:2x2x1
jax: 0.10.0
libtpu: 0.0.40
codegen_flags: <defaults>
</compile_context>

<pallas_src>
import jax
import jax.numpy as jnp
from jax.experimental import pallas as pl
from jax.experimental.pallas import tpu as pltpu


# ------------------------- init_decoder_state kernel -------------------------

def _init_state_kernel(z_ref, enc_ref, wz2h_t_ref, bz2h_ref,
                       wo2p_enc_t_ref, wo2p_z_t_ref, bo2p_ref, out_ref):
    """Fused z2h -> repeat(L) -> o2p(cat([enc_hidden, z_code], 2)).

    The tile/concat are folded algebraically:
      o2p(cat([h, zc])) = h @ Wenc^T + (zc @ Wz^T + b),  Wenc = W[:, :H], Wz = W[:, H:].
    All weights arrive pre-transposed to (in_features, out_features).
    """
    L, B, H = enc_ref.shape
    zc = jnp.dot(z_ref[...], wz2h_t_ref[...],
                 preferred_element_type=jnp.float32) + bz2h_ref[...]          # (B, H)
    z_part = jnp.dot(zc, wo2p_z_t_ref[...],
                     preferred_element_type=jnp.float32) + bo2p_ref[...]       # (B, H)
    enc_part = jnp.dot(enc_ref[...].reshape(L * B, H), wo2p_enc_t_ref[...],
                       preferred_element_type=jnp.float32).reshape(L, B, H)
    out_ref[...] = enc_part + z_part                                           # bcast over L


def init_state_transform(z, enc_hidden, w_z2h_t, b_z2h, w_o2p_enc_t, w_o2p_z_t, b_o2p):
    L, B, H = enc_hidden.shape
    return pl.pallas_call(
        _init_state_kernel,
        out_shape=jax.ShapeDtypeStruct((L, B, H), jnp.float32),
        in_specs=[pl.BlockSpec(memory_space=pltpu.MemorySpace.VMEM)] * 7,
        out_specs=pl.BlockSpec(memory_space=pltpu.MemorySpace.VMEM),
        compiler_params=pltpu.CompilerParams(vmem_limit_bytes=32 * 1024 * 1024),
    )(z, enc_hidden, w_z2h_t, b_z2h, w_o2p_enc_t, w_o2p_z_t, b_o2p)


# ------------------- fused GRU + GlobalAttention forward kernel -------------------

def _decoder_fwd_kernel(emb_ref, h0_ref, ctx_ref,
                        wih_t_ref, whh_t_ref, bih_ref, bhh_ref,
                        win_t_ref, woutc_t_ref, woutt_t_ref,
                        out_ref, attn_ref, hfin_ref, rnn_scratch):
    # emb: (T, B, H) f32   h0: (L, B, H) f32   ctx: (B, S, H) f32 (batch-major already)
    # wih_t/whh_t: (L, H, 3H) bf16 pre-transposed   bih/bhh: (L, 1, 3H) f32
    # win_t / woutc_t / woutt_t: (H, H) bf16 pre-split/transposed
    # rnn_scratch: (B, T, H) f32 VMEM scratch (batch-major RNN outputs)
    T, B, H = emb_ref.shape
    L = h0_ref.shape[0]
    H3 = 3 * H
    f32 = jnp.float32
    bf16 = jnp.bfloat16

    # ---------------- multi-layer GRU (PyTorch gate order: r, z, n) ----------------
    # Layer-0 input gates for ALL timesteps as one big MXU matmul (off the recurrence).
    gi0 = (jnp.dot(emb_ref[...].astype(bf16).reshape(T * B, H), wih_t_ref[0],
                   preferred_element_type=f32)
           + bih_ref[0]).reshape(T, B, H3)
    # TODO(synk): at production T/B/H, compute gi0 per T-chunk (or store bf16) so it does
    # not dominate v7x's 64 MiB VMEM.

    # Hoist per-layer weight loads and bias broadcasts out of the time loop.
    whh_t = [whh_t_ref[l] for l in range(L)]
    wih_t = [wih_t_ref[l] for l in range(1, L)]
    bih = [jnp.broadcast_to(bih_ref[l], (B, H3)) for l in range(1, L)]
    bhh = [jnp.broadcast_to(bhh_ref[l], (B, H3)) for l in range(L)]

    h = [h0_ref[l] for l in range(L)]
    for t in range(T):                        # static unroll: T is a compile-time constant
        # Hidden-to-hidden gates for ALL layers up front: L back-to-back MXU pushes that
        # overlap with layer-0's sigmoid/tanh instead of sitting on the layer-serial path.
        gh = [jnp.dot(h[l].astype(bf16), whh_t[l], preferred_element_type=f32) + bhh[l]
              for l in range(L)]
        x = None
        for l in range(L):                    # static layer loop
            if l == 0:
                gi = gi0[t]
            else:
                gi = jnp.dot(x.astype(bf16), wih_t[l - 1],
                             preferred_element_type=f32) + bih[l - 1]
            r = jax.nn.sigmoid(gi[:, 0:H] + gh[l][:, 0:H])
            z = jax.nn.sigmoid(gi[:, H:2 * H] + gh[l][:, H:2 * H])
            n = jnp.tanh(gi[:, 2 * H:] + r * gh[l][:, 2 * H:])
            hnew = (1.0 - z) * n + z * h[l]
            h[l] = hnew
            x = hnew                          # inter-layer dropout p=0.0 -> identity
        rnn_scratch[:, t, :] = x              # batch-major as we go: no stack/transpose copies
    # TODO(synk): for large T switch to lax.fori_loop(..., unroll=4..8) carrying h.

    for l in range(L):
        hfin_ref[l] = h[l]

    # ---------------- GlobalAttention(attn_type="general"), fused ----------------
    src_bf = ctx_ref[...].astype(bf16)                          # (B, S, H)
    tgt = rnn_scratch[...]                                      # (B, T, H) f32
    tgt_bf = tgt.astype(bf16)

    proj = jnp.dot(tgt_bf.reshape(B * T, H), win_t_ref[...],
                   preferred_element_type=f32).reshape(B, T, H)
    scores = jnp.einsum('bth,bsh->bts', proj.astype(bf16), src_bf,
                        preferred_element_type=f32)             # (B, T, S)
    m = jnp.max(scores, axis=-1, keepdims=True)
    e = jnp.exp(scores - m)
    # exact softmax normalization: align is a user-visible output (attns["std"])
    align = e / jnp.sum(e, axis=-1, keepdims=True)
    c = jnp.einsum('bts,bsh->bth', align.astype(bf16), src_bf,
                   preferred_element_type=f32)                  # (B, T, H)

    # linear_out(cat([c, tgt], -1)) without the concat (weight pre-split/transposed)
    attn_h = jnp.tanh(
        jnp.dot(c.astype(bf16).reshape(B * T, H), woutc_t_ref[...],
                preferred_element_type=f32)
        + jnp.dot(tgt_bf.reshape(B * T, H), woutt_t_ref[...],
                  preferred_element_type=f32)).reshape(B, T, H)

    # dropout(p=0.0) = identity; outputs stay batch-major (lane-dense last dims)
    out_ref[...] = attn_h                                       # (B, T, H)
    attn_ref[...] = align                                       # (B, T, S)
    # TODO(synk): no source-length masking in the softmax (OpenNMT applies one only when
    # lengths are provided); fine for full-length, unpadded source sequences.


def decoder_forward(emb, h0, context_bm,
                    w_ih_t, w_hh_t, b_ih, b_hh,
                    w_attn_in_t, w_attn_out_c_t, w_attn_out_t_t):
    T, B, H = emb.shape
    L = h0.shape[0]
    S = context_bm.shape[1]
    return pl.pallas_call(
        _decoder_fwd_kernel,
        out_shape=(jax.ShapeDtypeStruct((B, T, H), jnp.float32),   # attn_h (batch-major)
                   jax.ShapeDtypeStruct((B, T, S), jnp.float32),   # align  (batch-major)
                   jax.ShapeDtypeStruct((L, B, H), jnp.float32)),  # final hidden
        in_specs=[pl.BlockSpec(memory_space=pltpu.MemorySpace.VMEM)] * 10,
        out_specs=(pl.BlockSpec(memory_space=pltpu.MemorySpace.VMEM),) * 3,
        scratch_shapes=[pltpu.VMEM((B, T, H), jnp.float32)],
        compiler_params=pltpu.CompilerParams(vmem_limit_bytes=32 * 1024 * 1024),
    )(emb, h0, context_bm, w_ih_t, w_hh_t, b_ih, b_hh,
      w_attn_in_t, w_attn_out_c_t, w_attn_out_t_t)
    # TODO(synk): at production sizes, add a grid over B with BlockSpecs and
    # dimension_semantics=("parallel",) (2-TC sharding on v7x, pipelining everywhere),
    # pad H/S to 128 and B to 8/16, and consider pipeline_mode=pl.Buffered(3) on ctx/emb.


# --------------------------- Module-level wrapper ---------------------------

class RNNDecoderState:
    def __init__(self, context, hidden_size, rnnstate):
        if not isinstance(rnnstate, tuple):
            self.hidden = (rnnstate,)
        else:
            self.hidden = rnnstate
        self.coverage = None
        batch_size = context.shape[1]
        self.input_feed = jnp.zeros((1, batch_size, hidden_size), jnp.float32)

    def update_state(self, rnnstate, input_feed, coverage):
        if not isinstance(rnnstate, tuple):
            self.hidden = (rnnstate,)
        else:
            self.hidden = rnnstate
        self.input_feed = input_feed
        self.coverage = coverage


class VAERNNDecoderBase:
    def __init__(self, rnn_type, bidirectional_encoder, num_layers, hidden_size,
                 attn_type, coverage_attn, context_gate, copy_attn, dropout,
                 vocab_size, hidden_code_len=20, hidden_code=None, *, key):
        assert rnn_type == "GRU" and attn_type == "general"
        assert not coverage_attn and context_gate is None and not copy_attn
        self.bidirectional_encoder = bidirectional_encoder
        self.num_layers = num_layers
        self.hidden_size = hidden_size
        self.hidden_code_len = hidden_code_len
        self.hidden_code = hidden_code
        self.dropout_p = dropout          # dropout=0.0 -> identity (eval-mode exact)

        H, L, Z = hidden_size, num_layers, hidden_code_len
        ks = jax.random.split(key, 10)
        s = 0.1
        # embeddings (embedding_size == hidden_size)
        self.emb_table = s * jax.random.normal(ks[0], (vocab_size, H), jnp.float32)
        # PyTorch-layout parameters
        w_z2h = s * jax.random.normal(ks[1], (H, Z), jnp.float32)        # Linear(Z, H)
        b_z2h = s * jax.random.normal(ks[2], (H,), jnp.float32)
        w_o2p = s * jax.random.normal(ks[3], (H, 2 * H), jnp.float32)    # Linear(2H, H)
        b_o2p = s * jax.random.normal(ks[4], (H,), jnp.float32)
        w_ih = s * jax.random.normal(ks[5], (L, 3 * H, H), jnp.float32)  # GRU stacked
        w_hh = s * jax.random.normal(ks[6], (L, 3 * H, H), jnp.float32)
        self.b_ih = s * jax.random.normal(ks[7], (L, 1, 3 * H), jnp.float32)
        self.b_hh = s * jax.random.normal(ks[8], (L, 1, 3 * H), jnp.float32)
        ka, kb = jax.random.split(ks[9])
        w_attn_in = s * jax.random.normal(ka, (H, H), jnp.float32)       # linear_in, no bias
        w_attn_out = s * jax.random.normal(kb, (H, 2 * H), jnp.float32)  # linear_out, no bias

        # Pre-transposed / pre-split weights (host-side, once) so kernels never transpose.
        # GRU / attention weights cast to bf16 (MXU native rate, half the VMEM/DMA bytes);
        # all matmuls accumulate in f32 and all elementwise gate math stays f32.
        self.w_z2h_t = jnp.transpose(w_z2h)                               # (Z, H) f32
        self.b_z2h = b_z2h.reshape(1, H)
        self.w_o2p_enc_t = jnp.transpose(w_o2p[:, :H])                    # (H, H) f32
        self.w_o2p_z_t = jnp.transpose(w_o2p[:, H:])                      # (H, H) f32
        self.b_o2p = b_o2p.reshape(1, H)
        self.w_ih_t = jnp.transpose(w_ih, (0, 2, 1)).astype(jnp.bfloat16)  # (L, H, 3H)
        self.w_hh_t = jnp.transpose(w_hh, (0, 2, 1)).astype(jnp.bfloat16)  # (L, H, 3H)
        self.w_attn_in_t = jnp.transpose(w_attn_in).astype(jnp.bfloat16)       # (H, H)
        self.w_attn_out_c_t = jnp.transpose(w_attn_out[:, :H]).astype(jnp.bfloat16)  # (H, H)
        self.w_attn_out_t_t = jnp.transpose(w_attn_out[:, H:]).astype(jnp.bfloat16)  # (H, H)

    # ------------------------------------------------------------------ #
    def _fix_enc_hidden(self, h):
        if self.bidirectional_encoder:
            h = jnp.concatenate([h[0::2], h[1::2]], axis=2)
        return h

    def init_decoder_state(self, src, context, enc_hidden, z):
        H = self.hidden_size
        _, B, Z = z.shape
        hidden = init_state_transform(
            z.reshape(B, Z), enc_hidden,
            self.w_z2h_t, self.b_z2h,
            self.w_o2p_enc_t, self.w_o2p_z_t, self.b_o2p)
        return RNNDecoderState(context, H, self._fix_enc_hidden(hidden))

    # ------------------------------------------------------------------ #
    def _run_forward_pass(self, input_tokens, context, state, hidden_code=None):
        # embedding lookup (glue); GRU + attention fused into one Pallas kernel.
        # TODO(synk): fold the gather into the kernel via scalar prefetch once T grows.
        emb = jnp.take(self.emb_table, input_tokens[:, :, 0], axis=0)   # (T, B, H)
        # wrapper-side layout plumbing: feed context batch-major, get outputs batch-major
        context_bm = jnp.transpose(context, (1, 0, 2))                  # (B, S, H)
        out_bm, attn_bm, hidden = decoder_forward(
            emb, state.hidden[0], context_bm,
            self.w_ih_t, self.w_hh_t, self.b_ih, self.b_hh,
            self.w_attn_in_t, self.w_attn_out_c_t, self.w_attn_out_t_t)
        outputs = jnp.transpose(out_bm, (1, 0, 2))                      # (T, B, H)
        align = jnp.transpose(attn_bm, (1, 0, 2))                       # (T, B, S)
        attns = {"std": align}
        coverage = None
        return hidden, outputs, attns, coverage

    def forward(self, input_tokens, context, state, hidden_code=None):
        assert isinstance(state, RNNDecoderState)
        assert input_tokens.shape[1] == context.shape[1]
        hidden, outputs, attns, coverage = self._run_forward_pass(
            input_tokens, context, state, hidden_code)
        final_output = outputs[-1]
        state.update_state(hidden, final_output[None, ...],
                           coverage[None, ...] if coverage is not None else None)
        # outputs already stacked as (T, B, H); attns already (T, B, S)
        return outputs, state, attns

    # TODO(synk): DecoderState.beam_update / repeat_beam_size_times / detach (beam-search
    # bookkeeping) and pack/pad_packed_sequence have no kernel-side equivalent here.


# --------------------------------- main -------------------------------------

if __name__ == "__main__":
    key = jax.random.PRNGKey(0)
    k_tok, k_ctx, k_enc, k_z, k_par = jax.random.split(key, 5)

    VOCAB, T, S, B, H, L, Z = 50, 6, 8, 2, 32, 2, 20

    dec = VAERNNDecoderBase(
        rnn_type="GRU", bidirectional_encoder=False, num_layers=L,
        hidden_size=H, attn_type="general", coverage_attn=False,
        context_gate=None, copy_attn=False, dropout=0.0,
        vocab_size=VOCAB, hidden_code_len=Z, key=k_par)

    input_tokens = jax.random.randint(k_tok, (T, B, 1), 0, VOCAB, dtype=jnp.int32)
    context = jax.random.normal(k_ctx, (S, B, H), jnp.float32)
    enc_hidden = jax.random.normal(k_enc, (L, B, H), jnp.float32)
    z = jax.random.normal(k_z, (1, B, Z), jnp.float32)

    state = dec.init_decoder_state(None, context, enc_hidden, z)
    outputs, state, attns = dec.forward(input_tokens, context, state)

    outputs = jax.block_until_ready(outputs)
    align = jax.block_until_ready(attns["std"])
    hidden = jax.block_until_ready(state.hidden[0])

    assert outputs.shape == (T, B, H)
    assert align.shape == (T, B, S)
    assert hidden.shape == (L, B, H)
    assert state.input_feed.shape == (1, B, H)
    assert bool(jnp.all(jnp.isfinite(outputs)))
    assert bool(jnp.all(jnp.isfinite(align)))
    assert bool(jnp.all(jnp.isfinite(hidden)))
    # attention rows are exactly softmax-normalized (exact denominator)
    assert bool(jnp.all(jnp.abs(jnp.sum(align, axis=-1) - 1.0) < 1e-3))
    print("KERNEL_OK")
</pallas_src>

<mosaic_0001>
module attributes {stable_mosaic.version = 11 : i64} {
  func.func @_init_state_kernel(%arg0: memref<2x20xf32, #tpu.memory_space<vmem>>, %arg1: memref<2x2x32xf32, #tpu.memory_space<vmem>>, %arg2: memref<20x32xf32, #tpu.memory_space<vmem>>, %arg3: memref<1x32xf32, #tpu.memory_space<vmem>>, %arg4: memref<32x32xf32, #tpu.memory_space<vmem>>, %arg5: memref<32x32xf32, #tpu.memory_space<vmem>>, %arg6: memref<1x32xf32, #tpu.memory_space<vmem>>, %arg7: memref<2x2x32xf32, #tpu.memory_space<vmem>>) attributes {dimension_semantics = [], scalar_prefetch = 0 : i64, scratch_operands = 0 : i64, tpu.core_type = #tpu.core_type<tc>} {
    %c0 = arith.constant 0 : index
    %c0_0 = arith.constant 0 : index
    %0 = vector.load %arg0[%c0, %c0_0] : memref<2x20xf32, #tpu.memory_space<vmem>>, vector<2x20xf32>
    %c0_1 = arith.constant 0 : index
    %c0_2 = arith.constant 0 : index
    %1 = vector.load %arg2[%c0_1, %c0_2] : memref<20x32xf32, #tpu.memory_space<vmem>>, vector<20x32xf32>
    %cst = arith.constant dense<0.000000e+00> : vector<2x32xf32>
    %2 = tpu.matmul %0, %1, %cst {dimension_numbers = #tpu.dot_dimension_numbers<[1], [0], [0], [1], [0, 0, 1, 1], [], []>} : vector<2x20xf32>, vector<20x32xf32>, vector<2x32xf32> -> vector<2x32xf32>
    %c0_3 = arith.constant 0 : index
    %c0_4 = arith.constant 0 : index
    %3 = vector.load %arg3[%c0_3, %c0_4] : memref<1x32xf32, #tpu.memory_space<vmem>>, vector<1x32xf32>
    %4 = vector.broadcast %3 : vector<1x32xf32> to vector<2x32xf32>
    %5 = arith.addf %2, %4 : vector<2x32xf32>
    %c0_5 = arith.constant 0 : index
    %c0_6 = arith.constant 0 : index
    %6 = vector.load %arg5[%c0_5, %c0_6] : memref<32x32xf32, #tpu.memory_space<vmem>>, vector<32x32xf32>
    %cst_7 = arith.constant dense<0.000000e+00> : vector<2x32xf32>
    %7 = tpu.matmul %5, %6, %cst_7 {dimension_numbers = #tpu.dot_dimension_numbers<[1], [0], [0], [1], [0, 0, 1, 1], [], []>} : vector<2x32xf32>, vector<32x32xf32>, vector<2x32xf32> -> vector<2x32xf32>
    %c0_8 = arith.constant 0 : index
    %c0_9 = arith.constant 0 : index
    %8 = vector.load %arg6[%c0_8, %c0_9] : memref<1x32xf32, #tpu.memory_space<vmem>>, vector<1x32xf32>
    %9 = vector.broadcast %8 : vector<1x32xf32> to vector<2x32xf32>
    %10 = arith.addf %7, %9 : vector<2x32xf32>
    %c0_10 = arith.constant 0 : index
    %c0_11 = arith.constant 0 : index
    %c0_12 = arith.constant 0 : index
    %11 = vector.load %arg1[%c0_10, %c0_11, %c0_12] : memref<2x2x32xf32, #tpu.memory_space<vmem>>, vector<2x2x32xf32>
    %12 = vector.shape_cast %11 : vector<2x2x32xf32> to vector<4x32xf32>
    %c0_13 = arith.constant 0 : index
    %c0_14 = arith.constant 0 : index
    %13 = vector.load %arg4[%c0_13, %c0_14] : memref<32x32xf32, #tpu.memory_space<vmem>>, vector<32x32xf32>
    %cst_15 = arith.constant dense<0.000000e+00> : vector<4x32xf32>
    %14 = tpu.matmul %12, %13, %cst_15 {dimension_numbers = #tpu.dot_dimension_numbers<[1], [0], [0], [1], [0, 0, 1, 1], [], []>} : vector<4x32xf32>, vector<32x32xf32>, vector<4x32xf32> -> vector<4x32xf32>
    %15 = vector.shape_cast %14 : vector<4x32xf32> to vector<2x2x32xf32>
    %16 = vector.shape_cast %10 : vector<2x32xf32> to vector<1x2x32xf32>
    %17 = vector.broadcast %16 : vector<1x2x32xf32> to vector<2x2x32xf32>
    %18 = arith.addf %15, %17 : vector<2x2x32xf32>
    %c0_16 = arith.constant 0 : index
    %c0_17 = arith.constant 0 : index
    %c0_18 = arith.constant 0 : index
    %19 = vector.load %arg7[%c0_16, %c0_17, %c0_18] : memref<2x2x32xf32, #tpu.memory_space<vmem>>, vector<2x2x32xf32>
    tpu.vector_store %arg7[%c0_16, %c0_17, %c0_18], %18 {strides = array<i32>} : memref<2x2x32xf32, #tpu.memory_space<vmem>>, vector<2x2x32xf32>,
    return
  }
}

</mosaic_0001>

<llo_original>
// kernel: tpu_custom_call.1
$region0: #{tpu_custom_call.1}
  #allocation0 [shape = 'u32[]', space=smem, size = 0x4, offset = 0x4, fixed_abs, tag = 'smem constant byte address 0x4 - core index']
  #allocation1 [shape = 'u32[144,128]{1,0:T(1,128)}', space=vmem, size = 0x12000, scoped, tag = 'internal scratch']
  %s0 = inlined_call_operand.hbm [shape: f32[2,20], index: 0, kind: input, shape index: {}]
  %s1 = inlined_call_operand.hbm [shape: f32[2,2,32], index: 1, kind: input, shape index: {}]
  %s2 = inlined_call_operand.hbm [shape: f32[20,32], index: 2, kind: input, shape index: {}]
  %s3 = inlined_call_operand.vmem [shape: f32[1,32], index: 3, kind: input, shape index: {}]
  %s4 = inlined_call_operand.hbm [shape: f32[32,32], index: 4, kind: input, shape index: {}]
  %s5 = inlined_call_operand.hbm [shape: f32[32,32], index: 5, kind: input, shape index: {}]
  %s6 = inlined_call_operand.vmem [shape: f32[1,32], index: 6, kind: input, shape index: {}]
  %s7 = inlined_call_operand.hbm [shape: f32[2,2,32], index: 7, kind: output, shape index: {}]
  %s8 = sld [smem:[#allocation0]]
  $region58: #{tpu_custom_call.1} parent=0
    _
  %s10 = ssub.s32 1, %s8
  %s11 = scalar_select 0, %s10, %s8
  $region1: #{tpu_custom_call.1} parent=0
    #allocation2 [shape = 'u8[1024]{0}', space=vmem, size = 0x400, scoped, tag = 'input window, operand 0, single buffered']
    #allocation3 [shape = 's32[1]{0}', space=sflag, size = 0x4, scoped, tag = 'scoped memory for tpu_custom_call.1']
    #allocation4 [shape = 's32[1]{0}', space=sflag, size = 0x4, scoped, tag = 'scoped memory for tpu_custom_call.1']
    #allocation5 [shape = 'u8[2048]{0}', space=vmem, size = 0x800, scoped, tag = 'input window, operand 1, single buffered']
    #allocation6 [shape = 's32[1]{0}', space=sflag, size = 0x4, scoped, tag = 'scoped memory for tpu_custom_call.1']
    #allocation7 [shape = 'u8[12288]{0}', space=vmem, size = 0x3000, scoped, tag = 'input window, operand 2, single buffered']
    #allocation8 [shape = 'u8[16384]{0}', space=vmem, size = 0x4000, scoped, tag = 'input window, operand 4, single buffered']
    #allocation9 [shape = 's32[1]{0}', space=sflag, size = 0x4, scoped, tag = 'scoped memory for tpu_custom_call.1']
    #allocation10 [shape = 'u8[16384]{0}', space=vmem, size = 0x4000, scoped, tag = 'input window, operand 5, single buffered']
    #allocation11 [shape = 'u8[2048]{0}', space=vmem, size = 0x800, scoped, tag = 'output window, operand 0, single buffered']
    %12 = vsyncpa [#allocation3], 0
    %13 = vsyncpa [#allocation6], 0
    %14 = vsyncpa [#allocation9], 0
    %15 = vsyncpa [#allocation4], 0
    // Predicated region
    $region2: #{tpu_custom_call.1} parent=1 // pred_check
      _
    $region3: #{tpu_custom_call.1} parent=1 // pred_check_branch
      %17 = sbr.rel (0) target = $region5
    $region4: #{tpu_custom_call.1} parent=1 // pred_region
      %s19 = ssub.s32 32, 32
      %20 = vsyncadd [#allocation3], %s19
      %s22 = sshll.u32 [#allocation2], 4
      %s23 = int_to_ptr.vmem [resolvable:$true] %s22
      %25 = dma.hbm_to_vmem [thread:$0]  %s0, 32, %s23, [#allocation3]
    $region5: #{tpu_custom_call.1} parent=1 // pred_fallthru
      _
    // Predicated region
    $region6: #{tpu_custom_call.1} parent=1 // pred_check
      _
    $region7: #{tpu_custom_call.1} parent=1 // pred_check_branch
      %27 = sbr.rel (0) target = $region9
    $region8: #{tpu_custom_call.1} parent=1 // pred_region
      %s29 = ssub.s32 64, 64
      %30 = vsyncadd [#allocation6], %s29
      %s31 = sshll.u32 [#allocation5], 4
      %s32 = int_to_ptr.vmem [resolvable:$true] %s31
      %37 = dma.hbm_to_vmem [thread:$0]  %s1, 64, %s32, [#allocation6], 32, 32, 2
    $region9: #{tpu_custom_call.1} parent=1 // pred_fallthru
      _
    // Predicated region
    $region10: #{tpu_custom_call.1} parent=1 // pred_check
      _
    $region11: #{tpu_custom_call.1} parent=1 // pred_check_branch
      %39 = sbr.rel (0) target = $region13
    $region12: #{tpu_custom_call.1} parent=1 // pred_region
      %s41 = ssub.s32 384, 384
      %42 = vsyncadd [#allocation6], %s41
      %s43 = sshll.u32 [#allocation7], 4
      %s44 = int_to_ptr.vmem [resolvable:$true] %s43
      %49 = dma.hbm_to_vmem [thread:$0]  %s2, 384, %s44, [#allocation6], 128, 128, 8
    $region13: #{tpu_custom_call.1} parent=1 // pred_fallthru
      _
    // Predicated region
    $region14: #{tpu_custom_call.1} parent=1 // pred_check
      _
    $region15: #{tpu_custom_call.1} parent=1 // pred_check_branch
      %51 = sbr.rel (0) target = $region17
    $region16: #{tpu_custom_call.1} parent=1 // pred_region
      _
    $region17: #{tpu_custom_call.1} parent=1 // pred_fallthru
      _
    // Predicated region
    $region18: #{tpu_custom_call.1} parent=1 // pred_check
      _
    $region19: #{tpu_custom_call.1} parent=1 // pred_check_branch
      %53 = sbr.rel (0) target = $region21
    $region20: #{tpu_custom_call.1} parent=1 // pred_region
      %s55 = ssub.s32 512, 512
      %56 = vsyncadd [#allocation9], %s55
      %s57 = sshll.u32 [#allocation8], 4
      %s58 = int_to_ptr.vmem [resolvable:$true] %s57
      %63 = dma.hbm_to_vmem [thread:$0]  %s4, 512, %s58, [#allocation9], 128, 128, 8
    $region21: #{tpu_custom_call.1} parent=1 // pred_fallthru
      _
    // Predicated region
    $region22: #{tpu_custom_call.1} parent=1 // pred_check
      _
    $region23: #{tpu_custom_call.1} parent=1 // pred_check_branch
      %65 = sbr.rel (0) target = $region25
    $region24: #{tpu_custom_call.1} parent=1 // pred_region
      %s67 = ssub.s32 512, 512
      %68 = vsyncadd [#allocation9], %s67
      %s69 = sshll.u32 [#allocation10], 4
      %s70 = int_to_ptr.vmem [resolvable:$true] %s69
      %75 = dma.hbm_to_vmem [thread:$0]  %s5, 512, %s70, [#allocation9], 128, 128, 8
    $region25: #{tpu_custom_call.1} parent=1 // pred_fallthru
      _
    // Predicated region
    $region26: #{tpu_custom_call.1} parent=1 // pred_check
      _
    $region27: #{tpu_custom_call.1} parent=1 // pred_check_branch
      %77 = sbr.rel (0) target = $region29
    $region28: #{tpu_custom_call.1} parent=1 // pred_region
      _
    $region29: #{tpu_custom_call.1} parent=1 // pred_fallthru
      _
    // Predicated region
    $region30: #{tpu_custom_call.1} parent=1 // pred_check
      _
    $region31: #{tpu_custom_call.1} parent=1 // pred_check_branch
      %79 = sbr.rel (0) target = $region33
    $region32: #{tpu_custom_call.1} parent=1 // pred_region
      %80 = dma.done [#allocation3], 32
    $region33: #{tpu_custom_call.1} parent=1 // pred_fallthru
      _
    // Predicated region
    $region34: #{tpu_custom_call.1} parent=1 // pred_check
      _
    $region35: #{tpu_custom_call.1} parent=1 // pred_check_branch
      %82 = sbr.rel (0) target = $region37
    $region36: #{tpu_custom_call.1} parent=1 // pred_region
      %83 = dma.done [#allocation6], 64
    $region37: #{tpu_custom_call.1} parent=1 // pred_fallthru
      _
    // Predicated region
    $region38: #{tpu_custom_call.1} parent=1 // pred_check
      _
    $region39: #{tpu_custom_call.1} parent=1 // pred_check_branch
      %85 = sbr.rel (0) target = $region41
    $region40: #{tpu_custom_call.1} parent=1 // pred_region
      %86 = dma.done [#allocation6], 384
    $region41: #{tpu_custom_call.1} parent=1 // pred_fallthru
      _
    // Predicated region
    $region42: #{tpu_custom_call.1} parent=1 // pred_check
      _
    $region43: #{tpu_custom_call.1} parent=1 // pred_check_branch
      %88 = sbr.rel (0) target = $region45
    $region44: #{tpu_custom_call.1} parent=1 // pred_region
      %89 = dma.done [#allocation9], 512
    $region45: #{tpu_custom_call.1} parent=1 // pred_fallthru
      _
    // Predicated region
    $region46: #{tpu_custom_call.1} parent=1 // pred_check
      _
    $region47: #{tpu_custom_call.1} parent=1 // pred_check_branch
      %91 = sbr.rel (0) target = $region49
    $region48: #{tpu_custom_call.1} parent=1 // pred_region
      %92 = dma.done [#allocation9], 512
    $region49: #{tpu_custom_call.1} parent=1 // pred_fallthru
      _
    %v93 = vld [vmem:[#allocation2] sm:$0x3]
    %v94 = vld [vmem:[#allocation7] sm:$0xff]
    %v95 = vld [vmem:[#allocation7 + $0x8] sm:$0xff]
    %v96 = vld [vmem:[#allocation7 + $0x10] sm:$0xf]
    %v97 = vld [vmem:[%s3] sm:$0x1]
    %v99 = vlaneseq
    %v100 = vshrl.u32 %v99, 7
    %v101 = vsub.s32 0, %v100
    %v102 = vrot.slane %v97, %v101
    %vm104 = vcmask 162816
    %v106 = vsel %vm104, %v93, 0
    %vm108 = vcmask 1043456
    %v110 = vsel %vm108, %v96, 0
    %112 = vmatprep.subr.mxu0 0.0
    %113 = vmatpush1.msra.mxu0 %v94
    %114 = vmatprep.subr.mxu0 0.0
    %115 = vmatpush1.msra.mxu0 %v95
    %116 = vmatprep.subr.mxu0 0.0
    %117 = vmatpush1.msra.mxu0 %v110
    %118 = vmatprep.subr.mxu0 0.0
    %119 = vmatpush1.msra.mxu0 0.0
    %120 = vmatprep.subr.mxu0 0.0
    %121 = vmatpush1.msra.mxu0 0.0
    %122 = vmatprep.subr.mxu0 0.0
    %123 = vmatpush1.msra.mxu0 0.0
    %124 = vmatprep.subr.mxu0 0.0
    %125 = vmatpush1.msra.mxu0 0.0
    %126 = vmatprep.subr.mxu0 0.0
    %127 = vmatpush1.msra.mxu0 0.0
    %128 = vmatprep.subr.mxu0 0.0
    %129 = vmatpush1.msra.mxu0 0.0
    %130 = vmatprep.subr.mxu0 0.0
    %131 = vmatpush1.msra.mxu0 0.0
    %132 = vmatprep.subr.mxu0 0.0
    %133 = vmatpush1.msra.mxu0 0.0
    %134 = vmatprep.subr.mxu0 0.0
    %135 = vmatpush1.msra.mxu0 0.0
    %136 = vmatprep.subr.mxu0 0.0
    %137 = vmatpush1.msra.mxu0 0.0
    %138 = vmatprep.subr.mxu0 0.0
    %139 = vmatpush1.msra.mxu0 0.0
    %140 = vmatprep.subr.mxu0 0.0
    %141 = vmatpush1.msra.mxu0 0.0
    %142 = vmatprep.subr.mxu0 0.0
    %143 = vmatpush1.msra.mxu0 0.0
    %144 = vmatprep.subr.mxu0 0.0
    %145 = vmatpush1.msra.mxu0 0.0
    %146 = vmatprep.subr.mxu0 0.0
    %147 = vmatpush1.msra.mxu0 0.0
    %148 = vmatprep.subr.mxu0 0.0
    %149 = vmatpush1.msra.mxu0 0.0
    %150 = vmatprep.subr.mxu0 0.0
    %151 = vmatpush1.msra.mxu0 0.0
    %152 = vmatprep.subr.mxu0 0.0
    %153 = vmatpush1.msra.mxu0 0.0
    %154 = vmatprep.subr.mxu0 0.0
    %155 = vmatpush1.msra.mxu0 0.0
    %156 = vmatprep.subr.mxu0 0.0
    %157 = vmatpush1.msra.mxu0 0.0
    %158 = vmatprep.subr.mxu0 0.0
    %159 = vmatpush1.msra.mxu0 0.0
    %160 = vmatprep.subr.mxu0 0.0
    %161 = vmatpush1.msra.mxu0 0.0
    %162 = vmatprep.subr.mxu0 0.0
    %163 = vmatpush1.msra.mxu0 0.0
    %164 = vmatprep.subr.mxu0 0.0
    %165 = vmatpush1.msra.mxu0 0.0
    %166 = vmatprep.subr.mxu0 0.0
    %167 = vmatpush1.msra.mxu0 0.0
    %168 = vmatprep.subr.mxu0 0.0
    %169 = vmatpush1.msra.mxu0 0.0
    %170 = vmatprep.subr.mxu0 0.0
    %171 = vmatpush1.msra.mxu0 0.0
    %172 = vmatprep.subr.mxu0 0.0
    %173 = vmatpush1.msra.mxu0 0.0
    %174 = vmatprep.subr.mxu0 0.0
    %175 = vmatpush1.msra.mxu0 0.0
    %176 = vmatprep.mubr.f32.mxu0 0.0
    %177 = vmatmul.mubr.f32.gmra.mrb[0].mxu0 %v106
    %v178 = vpop.f32.mrb[0].mxu0
    %v179 = vadd.f32 %v102, %v178
    %v180 = vpop.f32.mrb[0].mxu0
    %181 = vdwg.mxu0
    %v182 = vld [vmem:[#allocation10] sm:$0xff]
    %v183 = vld [vmem:[#allocation10 + $0x8] sm:$0xff]
    %v184 = vld [vmem:[#allocation10 + $0x10] sm:$0xff]
    %v185 = vld [vmem:[#allocation10 + $0x18] sm:$0xff]
    %v186 = vld [vmem:[%s6] sm:$0x1]
    %v188 = vlaneseq
    %v189 = vshrl.u32 %v188, 7
    %v190 = vsub.s32 0, %v189
    %v191 = vrot.slane %v186, %v190
    %vm193 = vcmask 261120
    %v195 = vsel %vm193, %v179, 0
    %197 = vmatprep.subr.mxu0 0.0
    %198 = vmatpush1.msra.mxu0 %v182
    %199 = vmatprep.subr.mxu0 0.0
    %200 = vmatpush1.msra.mxu0 %v183
    %201 = vmatprep.subr.mxu0 0.0
    %202 = vmatpush1.msra.mxu0 %v184
    %203 = vmatprep.subr.mxu0 0.0
    %204 = vmatpush1.msra.mxu0 %v185
    %205 = vmatprep.subr.mxu0 0.0
    %206 = vmatpush1.msra.mxu0 0.0
    %207 = vmatprep.subr.mxu0 0.0
    %208 = vmatpush1.msra.mxu0 0.0
    %209 = vmatprep.subr.mxu0 0.0
    %210 = vmatpush1.msra.mxu0 0.0
    %211 = vmatprep.subr.mxu0 0.0
    %212 = vmatpush1.msra.mxu0 0.0
    %213 = vmatprep.subr.mxu0 0.0
    %214 = vmatpush1.msra.mxu0 0.0
    %215 = vmatprep.subr.mxu0 0.0
    %216 = vmatpush1.msra.mxu0 0.0
    %217 = vmatprep.subr.mxu0 0.0
    %218 = vmatpush1.msra.mxu0 0.0
    %219 = vmatprep.subr.mxu0 0.0
    %220 = vmatpush1.msra.mxu0 0.0
    %221 = vmatprep.subr.mxu0 0.0
    %222 = vmatpush1.msra.mxu0 0.0
    %223 = vmatprep.subr.mxu0 0.0
    %224 = vmatpush1.msra.mxu0 0.0
    %225 = vmatprep.subr.mxu0 0.0
    %226 = vmatpush1.msra.mxu0 0.0
    %227 = vmatprep.subr.mxu0 0.0
    %228 = vmatpush1.msra.mxu0 0.0
    %229 = vmatprep.subr.mxu0 0.0
    %230 = vmatpush1.msra.mxu0 0.0
    %231 = vmatprep.subr.mxu0 0.0
    %232 = vmatpush1.msra.mxu0 0.0
    %233 = vmatprep.subr.mxu0 0.0
    %234 = vmatpush1.msra.mxu0 0.0
    %235 = vmatprep.subr.mxu0 0.0
    %236 = vmatpush1.msra.mxu0 0.0
    %237 = vmatprep.subr.mxu0 0.0
    %238 = vmatpush1.msra.mxu0 0.0
    %239 = vmatprep.subr.mxu0 0.0
    %240 = vmatpush1.msra.mxu0 0.0
    %241 = vmatprep.subr.mxu0 0.0
    %242 = vmatpush1.msra.mxu0 0.0
    %243 = vmatprep.subr.mxu0 0.0
    %244 = vmatpush1.msra.mxu0 0.0
    %245 = vmatprep.subr.mxu0 0.0
    %246 = vmatpush1.msra.mxu0 0.0
    %247 = vmatprep.subr.mxu0 0.0
    %248 = vmatpush1.msra.mxu0 0.0
    %249 = vmatprep.subr.mxu0 0.0
    %250 = vmatpush1.msra.mxu0 0.0
    %251 = vmatprep.subr.mxu0 0.0
    %252 = vmatpush1.msra.mxu0 0.0
    %253 = vmatprep.subr.mxu0 0.0
    %254 = vmatpush1.msra.mxu0 0.0
    %255 = vmatprep.subr.mxu0 0.0
    %256 = vmatpush1.msra.mxu0 0.0
    %257 = vmatprep.subr.mxu0 0.0
    %258 = vmatpush1.msra.mxu0 0.0
    %259 = vmatprep.subr.mxu0 0.0
    %260 = vmatpush1.msra.mxu0 0.0
    %261 = vmatprep.mubr.f32.mxu0 0.0
    %262 = vmatmul.mubr.f32.gmra.mrb[0].mxu0 %v195
    %v263 = vpop.f32.mrb[0].mxu0
    %v264 = vadd.f32 %v191, %v263
    %v265 = vpop.f32.mrb[0].mxu0
    %266 = vdwg.mxu0
    %v267 = vld [vmem:[#allocation5] sm:$0x3]
    %v268 = vld [vmem:[#allocation5 + $0x2] sm:$0x3]
    %v269 = vld [vmem:[#allocation8] sm:$0xff]
    %v270 = vld [vmem:[#allocation8 + $0x8] sm:$0xff]
    %v271 = vld [vmem:[#allocation8 + $0x10] sm:$0xff]
    %v272 = vld [vmem:[#allocation8 + $0x18] sm:$0xff]
    %v275 = vcombine.low %v267, %v268
    %v277 = vunpack.c.l.s4 1983009808
    %v278 = vunpack.c.0.s8 %v277
    %v279 = vlaneseq
    %v280 = vshrl.u32 %v279, 7
    %v281 = vsub.s32 %v278, %v280
    %v282 = vrot.slane %v275, %v281
    %v283 = vsel %vm193, %v282, 0
    %285 = vmatprep.subr.mxu0 0.0
    %286 = vmatpush1.msra.mxu0 %v269
    %287 = vmatprep.subr.mxu0 0.0
    %288 = vmatpush1.msra.mxu0 %v270
    %289 = vmatprep.subr.mxu0 0.0
    %290 = vmatpush1.msra.mxu0 %v271
    %291 = vmatprep.subr.mxu0 0.0
    %292 = vmatpush1.msra.mxu0 %v272
    %293 = vmatprep.subr.mxu0 0.0
    %294 = vmatpush1.msra.mxu0 0.0
    %295 = vmatprep.subr.mxu0 0.0
    %296 = vmatpush1.msra.mxu0 0.0
    %297 = vmatprep.subr.mxu0 0.0
    %298 = vmatpush1.msra.mxu0 0.0
    %299 = vmatprep.subr.mxu0 0.0
    %300 = vmatpush1.msra.mxu0 0.0
    %301 = vmatprep.subr.mxu0 0.0
    %302 = vmatpush1.msra.mxu0 0.0
    %303 = vmatprep.subr.mxu0 0.0
    %304 = vmatpush1.msra.mxu0 0.0
    %305 = vmatprep.subr.mxu0 0.0
    %306 = vmatpush1.msra.mxu0 0.0
    %307 = vmatprep.subr.mxu0 0.0
    %308 = vmatpush1.msra.mxu0 0.0
    %309 = vmatprep.subr.mxu0 0.0
    %310 = vmatpush1.msra.mxu0 0.0
    %311 = vmatprep.subr.mxu0 0.0
    %312 = vmatpush1.msra.mxu0 0.0
    %313 = vmatprep.subr.mxu0 0.0
    %314 = vmatpush1.msra.mxu0 0.0
    %315 = vmatprep.subr.mxu0 0.0
    %316 = vmatpush1.msra.mxu0 0.0
    %317 = vmatprep.subr.mxu0 0.0
    %318 = vmatpush1.msra.mxu0 0.0
    %319 = vmatprep.subr.mxu0 0.0
    %320 = vmatpush1.msra.mxu0 0.0
    %321 = vmatprep.subr.mxu0 0.0
    %322 = vmatpush1.msra.mxu0 0.0
    %323 = vmatprep.subr.mxu0 0.0
    %324 = vmatpush1.msra.mxu0 0.0
    %325 = vmatprep.subr.mxu0 0.0
    %326 = vmatpush1.msra.mxu0 0.0
    %327 = vmatprep.subr.mxu0 0.0
    %328 = vmatpush1.msra.mxu0 0.0
    %329 = vmatprep.subr.mxu0 0.0
    %330 = vmatpush1.msra.mxu0 0.0
    %331 = vmatprep.subr.mxu0 0.0
    %332 = vmatpush1.msra.mxu0 0.0
    %333 = vmatprep.subr.mxu0 0.0
    %334 = vmatpush1.msra.mxu0 0.0
    %335 = vmatprep.subr.mxu0 0.0
    %336 = vmatpush1.msra.mxu0 0.0
    %337 = vmatprep.subr.mxu0 0.0
    %338 = vmatpush1.msra.mxu0 0.0
    %339 = vmatprep.subr.mxu0 0.0
    %340 = vmatpush1.msra.mxu0 0.0
    %341 = vmatprep.subr.mxu0 0.0
    %342 = vmatpush1.msra.mxu0 0.0
    %343 = vmatprep.subr.mxu0 0.0
    %344 = vmatpush1.msra.mxu0 0.0
    %345 = vmatprep.subr.mxu0 0.0
    %346 = vmatpush1.msra.mxu0 0.0
    %347 = vmatprep.subr.mxu0 0.0
    %348 = vmatpush1.msra.mxu0 0.0
    %349 = vmatprep.mubr.f32.mxu0 0.0
    %350 = vmatmul.mubr.f32.gmra.mrb[0].mxu0 %v283
    %v351 = vpop.f32.mrb[0].mxu0
    %v352 = vadd.f32 0.0, %v351
    %v353 = vpop.f32.mrb[0].mxu0
    %354 = vdwg.mxu0
    %v357 = vunpack.c.l.s4 1983009808
    %v358 = vunpack.c.0.s8 %v357
    %v359 = vlaneseq
    %v360 = vshrl.u32 %v359, 7
    %v361 = vsub.s32 %v358, %v360
    %v362 = vrot.slane %v352, %v361
    %v363 = vcombine.high %v362, %v362
    %v366 = vadd.f32 %v362, %v264
    %v367 = vadd.f32 %v363, %v264
    %vm368 = vcmask 254976
    %369 = vst.msk [vmem:[#allocation11] sm:$0x3] %vm368, %v366
    %370 = vst.msk [vmem:[#allocation11 + $0x2] sm:$0x3] %vm368, %v367
    // Predicated region
    $region50: #{tpu_custom_call.1} parent=1 // pred_check
      _
    $region51: #{tpu_custom_call.1} parent=1 // pred_check_branch
      %372 = sbr.rel (0) target = $region53
    $region52: #{tpu_custom_call.1} parent=1 // pred_region
      %s374 = ssub.s32 64, 64
      %375 = vsyncadd [#allocation4], %s374
      %s376 = sshll.u32 [#allocation11], 4
      %s377 = int_to_ptr.vmem [resolvable:$true] %s376
      %382 = dma.vmem_to_hbm [thread:$0]  %s377, 64, %s7, [#allocation4], 32, 32, 2
    $region53: #{tpu_custom_call.1} parent=1 // pred_fallthru
      _
    // Predicated region
    $region54: #{tpu_custom_call.1} parent=1 // pred_check
      _
    $region55: #{tpu_custom_call.1} parent=1 // pred_check_branch
      %384 = sbr.rel (0) target = $region57
    $region56: #{tpu_custom_call.1} parent=1 // pred_region
      %385 = dma.done [#allocation4], 64
    $region57: #{tpu_custom_call.1} parent=1 // pred_fallthru
      _
    %386 = vsyncpa [#allocation3], 1
    %387 = vsyncpa [#allocation6], 1
    %388 = vsyncpa [#allocation9], 1
    %389 = vsyncpa [#allocation4], 1

</llo_original>
